<compile_context>
chip_gen: v7x
topology: tpu7x:2x2x1
jax: 0.10.0
libtpu: 0.0.40
codegen_flags: <defaults>
</compile_context>

<pallas_src>
import jax
import jax.numpy as jnp
from jax.experimental import pallas as pl
from jax.experimental.pallas import tpu as pltpu


def policy_mlp_kernel(x_ref, w1_ref, b1_ref, w2t_ref, b2_ref, o_ref):
    # x tile: [tile_b, d_in] f32 (streamed).  Params are f32 and VMEM-resident.
    x = x_ref[...]
    w1 = w1_ref[...]                      # [d_in, d_hidden]
    w2t = w2t_ref[...]                    # [d_out, d_hidden]
    d_in = w1.shape[0]
    d_out = w2t.shape[0]

    # Layer 1: K = d_in is tiny, so do it as d_in broadcast-FMAs on the VPU
    # (exact f32, no MXU push/pop on the critical path).
    h = b1_ref[...]                       # [1, d_hidden] -> broadcasts to [tile_b, d_hidden]
    for k in range(d_in):
        h = h + x[:, k:k + 1] * w1[k:k + 1, :]
    h = jnp.maximum(h, 0.0)

    # Layer 2: d_out lane-reductions (VPU mult + XLU reduce), f32 throughout.
    # Each column is written with a masked store into the (tile_b, d_out) output block.
    for j in range(d_out):
        col = jnp.sum(h * w2t[j:j + 1, :], axis=-1, keepdims=True) + b2_ref[:, j:j + 1]
        o_ref[:, j:j + 1] = col.astype(o_ref.dtype)


def prepare_policy_params(w1, b1, w2, b2):
    """One-time layout prep (hoisted out of the hot forward path, cache the result).

    Keeps everything f32 so the kernel matches the PyTorch module's numerics.
    Returns (w1 [d_in, h], b1 [1, h], w2^T [d_out, h], b2 [1, d_out]).
    """
    w1 = jnp.asarray(w1, jnp.float32)
    b1 = jnp.asarray(b1, jnp.float32).reshape(1, -1)
    w2t = jnp.asarray(w2, jnp.float32).T
    b2 = jnp.asarray(b2, jnp.float32).reshape(1, -1)
    return w1, b1, w2t, b2


def policy_forward(x, params, *, tile_b=2048, min_pallas_batch=64):
    """Policy forward pass. x: [B, d_in] f32 -> logits: [B, d_out] f32."""
    w1, b1, w2t, b2 = params
    B, d_in = x.shape
    d_hidden = w1.shape[1]
    d_out = w2t.shape[0]

    # Tiny-batch act() path: a standalone pallas_call is dispatch dominated here;
    # plain jnp lets XLA fuse the two small matmuls into surrounding softmax/sampling.
    if B <= min_pallas_batch:
        h = jnp.maximum(x @ w1 + b1, 0.0)
        return h @ w2t.T + b2

    # ---- batch tiling ----
    tile_b = max(8, (int(tile_b) // 8) * 8)              # multiple of 8 sublanes
    # v7x: keep >= 2 grid steps so the "parallel" batch axis can occupy both TensorCores.
    half_b = pl.cdiv(pl.cdiv(B, 2), 8) * 8
    tile_b = min(tile_b, max(8, half_b))
    n_tiles = pl.cdiv(B, tile_b)
    b_pad = n_tiles * tile_b
    # Zero-pad batch only when needed (padded rows yield garbage logits, sliced off below).
    x_p = x if b_pad == B else jnp.zeros((b_pad, d_in), x.dtype).at[:B].set(x)

    flops = 2 * b_pad * (d_in * d_hidden + d_hidden * d_out)
    bytes_accessed = 4 * (x_p.size + w1.size + b1.size + w2t.size + b2.size
                          + b_pad * d_out)

    out = pl.pallas_call(
        policy_mlp_kernel,
        out_shape=jax.ShapeDtypeStruct((b_pad, d_out), jnp.float32),
        grid_spec=pltpu.PrefetchScalarGridSpec(
            num_scalar_prefetch=0,
            grid=(n_tiles,),
            in_specs=[
                pl.BlockSpec((tile_b, d_in), lambda i: (i, 0)),      # streamed x tile
                pl.BlockSpec((d_in, d_hidden), lambda i: (0, 0)),    # resident w1
                pl.BlockSpec((1, d_hidden), lambda i: (0, 0)),       # resident b1
                pl.BlockSpec((d_out, d_hidden), lambda i: (0, 0)),   # resident w2^T
                pl.BlockSpec((1, d_out), lambda i: (0, 0)),          # resident b2
            ],
            out_specs=pl.BlockSpec((tile_b, d_out), lambda i: (i, 0)),
        ),
        compiler_params=pltpu.CompilerParams(
            # batch tiles are independent -> shard across v7x's 2 TCs; neutral on v5e/v6e
            dimension_semantics=("parallel",),
        ),
        cost_estimate=pl.CostEstimate(
            flops=flops, transcendentals=0, bytes_accessed=bytes_accessed),
    )(x_p, w1, b1, w2t, b2)

    return out if b_pad == B else out[:B]


def init_policy_params(key, input_dim, output_dim, hidden=64):
    """Deterministic init mimicking torch.nn.Linear default U(-1/sqrt(fan_in), +1/sqrt(fan_in))."""
    k1, k2, k3, k4 = jax.random.split(key, 4)
    bound1 = 1.0 / jnp.sqrt(jnp.float32(input_dim))
    bound2 = 1.0 / jnp.sqrt(jnp.float32(hidden))
    w1 = jax.random.uniform(k1, (input_dim, hidden), jnp.float32, -bound1, bound1)
    b1 = jax.random.uniform(k2, (hidden,), jnp.float32, -bound1, bound1)
    w2 = jax.random.uniform(k3, (hidden, output_dim), jnp.float32, -bound2, bound2)
    b2 = jax.random.uniform(k4, (output_dim,), jnp.float32, -bound2, bound2)
    return w1, b1, w2, b2


if __name__ == "__main__":
    key = jax.random.PRNGKey(0)
    k_params, k_small, k_big = jax.random.split(key, 3)

    # Shapes consistent with the module: CartPole-ish state dim 4, 2 actions, hidden 64.
    input_dim, output_dim = 4, 2
    w1, b1, w2, b2 = init_policy_params(k_params, input_dim, output_dim, hidden=64)
    params = prepare_policy_params(w1, b1, w2, b2)

    def reference(x):
        return jnp.maximum(x @ w1 + b1, 0.0) @ w2 + b2

    # 1) Tiny batch (the module's act() path): plain-jnp fast path.
    x_small = jax.random.normal(k_small, (2, input_dim), jnp.float32)
    out_small = jax.block_until_ready(policy_forward(x_small, params))
    assert out_small.shape == (2, output_dim)
    assert jnp.allclose(out_small, reference(x_small), atol=1e-5, rtol=1e-5)

    # 2) Same tiny batch forced through the Pallas kernel (exercises batch padding path).
    out_small_k = jax.block_until_ready(
        policy_forward(x_small, params, tile_b=8, min_pallas_batch=0))
    assert out_small_k.shape == (2, output_dim)
    assert jnp.allclose(out_small_k, reference(x_small), atol=1e-4, rtol=1e-4)

    # 3) Larger batch: multi-tile pipelined Pallas path (2 tiles of 512 rows).
    x_big = jax.random.normal(k_big, (1024, input_dim), jnp.float32)
    out_big = jax.block_until_ready(policy_forward(x_big, params))
    assert out_big.shape == (1024, output_dim)
    assert jnp.allclose(out_big, reference(x_big), atol=1e-4, rtol=1e-4)

    print("KERNEL_OK")
</pallas_src>

<mosaic_0001>
module attributes {stable_mosaic.version = 11 : i64} {
  func.func @policy_mlp_kernel(%arg0: i32, %arg1: memref<8x4xf32, #tpu.memory_space<vmem>>, %arg2: memref<4x64xf32, #tpu.memory_space<vmem>>, %arg3: memref<1x64xf32, #tpu.memory_space<vmem>>, %arg4: memref<2x64xf32, #tpu.memory_space<vmem>>, %arg5: memref<1x2xf32, #tpu.memory_space<vmem>>, %arg6: memref<8x2xf32, #tpu.memory_space<vmem>>) attributes {dimension_semantics = [#tpu.dimension_semantics<parallel>], iteration_bounds = array<i64: 1>, scalar_prefetch = 0 : i64, scratch_operands = 0 : i64, tpu.core_type = #tpu.core_type<tc>, window_params = [{transform_indices = @transform_0, window_bounds = array<i64: 8, 4>}, {pipeline_mode = #tpu.pipeline_mode<synchronous>, transform_indices = @transform_1, window_bounds = array<i64: 4, 64>}, {pipeline_mode = #tpu.pipeline_mode<synchronous>, transform_indices = @transform_2, window_bounds = array<i64: 1, 64>}, {pipeline_mode = #tpu.pipeline_mode<synchronous>, transform_indices = @transform_3, window_bounds = array<i64: 2, 64>}, {pipeline_mode = #tpu.pipeline_mode<synchronous>, transform_indices = @transform_4, window_bounds = array<i64: 1, 2>}, {transform_indices = @transform_5, window_bounds = array<i64: 8, 2>}]} {
    %c0 = arith.constant 0 : index
    %c0_0 = arith.constant 0 : index
    %0 = vector.load %arg1[%c0, %c0_0] : memref<8x4xf32, #tpu.memory_space<vmem>>, vector<8x4xf32>
    %c0_1 = arith.constant 0 : index
    %c0_2 = arith.constant 0 : index
    %1 = vector.load %arg2[%c0_1, %c0_2] : memref<4x64xf32, #tpu.memory_space<vmem>>, vector<4x64xf32>
    %c0_3 = arith.constant 0 : index
    %c0_4 = arith.constant 0 : index
    %2 = vector.load %arg4[%c0_3, %c0_4] : memref<2x64xf32, #tpu.memory_space<vmem>>, vector<2x64xf32>
    %c0_5 = arith.constant 0 : index
    %c0_6 = arith.constant 0 : index
    %3 = vector.load %arg3[%c0_5, %c0_6] : memref<1x64xf32, #tpu.memory_space<vmem>>, vector<1x64xf32>
    %4 = vector.extract_strided_slice %0 {offsets = [0, 0], sizes = [8, 1], strides = [1, 1]} : vector<8x4xf32> to vector<8x1xf32>
    %5 = vector.extract_strided_slice %1 {offsets = [0, 0], sizes = [1, 64], strides = [1, 1]} : vector<4x64xf32> to vector<1x64xf32>
    %6 = vector.broadcast %4 : vector<8x1xf32> to vector<8x64xf32>
    %7 = vector.broadcast %5 : vector<1x64xf32> to vector<8x64xf32>
    %8 = arith.mulf %6, %7 : vector<8x64xf32>
    %9 = vector.broadcast %3 : vector<1x64xf32> to vector<8x64xf32>
    %10 = arith.addf %9, %8 : vector<8x64xf32>
    %11 = vector.extract_strided_slice %0 {offsets = [0, 1], sizes = [8, 1], strides = [1, 1]} : vector<8x4xf32> to vector<8x1xf32>
    %12 = vector.extract_strided_slice %1 {offsets = [1, 0], sizes = [1, 64], strides = [1, 1]} : vector<4x64xf32> to vector<1x64xf32>
    %13 = vector.broadcast %11 : vector<8x1xf32> to vector<8x64xf32>
    %14 = vector.broadcast %12 : vector<1x64xf32> to vector<8x64xf32>
    %15 = arith.mulf %13, %14 : vector<8x64xf32>
    %16 = arith.addf %10, %15 : vector<8x64xf32>
    %17 = vector.extract_strided_slice %0 {offsets = [0, 2], sizes = [8, 1], strides = [1, 1]} : vector<8x4xf32> to vector<8x1xf32>
    %18 = vector.extract_strided_slice %1 {offsets = [2, 0], sizes = [1, 64], strides = [1, 1]} : vector<4x64xf32> to vector<1x64xf32>
    %19 = vector.broadcast %17 : vector<8x1xf32> to vector<8x64xf32>
    %20 = vector.broadcast %18 : vector<1x64xf32> to vector<8x64xf32>
    %21 = arith.mulf %19, %20 : vector<8x64xf32>
    %22 = arith.addf %16, %21 : vector<8x64xf32>
    %23 = vector.extract_strided_slice %0 {offsets = [0, 3], sizes = [8, 1], strides = [1, 1]} : vector<8x4xf32> to vector<8x1xf32>
    %24 = vector.extract_strided_slice %1 {offsets = [3, 0], sizes = [1, 64], strides = [1, 1]} : vector<4x64xf32> to vector<1x64xf32>
    %25 = vector.broadcast %23 : vector<8x1xf32> to vector<8x64xf32>
    %26 = vector.broadcast %24 : vector<1x64xf32> to vector<8x64xf32>
    %27 = arith.mulf %25, %26 : vector<8x64xf32>
    %28 = arith.addf %22, %27 : vector<8x64xf32>
    %cst = arith.constant 0.000000e+00 : f32
    %29 = vector.broadcast %cst : f32 to vector<8x64xf32>
    %30 = arith.maximumf %28, %29 : vector<8x64xf32>
    %31 = vector.extract_strided_slice %2 {offsets = [0, 0], sizes = [1, 64], strides = [1, 1]} : vector<2x64xf32> to vector<1x64xf32>
    %32 = vector.broadcast %31 : vector<1x64xf32> to vector<8x64xf32>
    %33 = arith.mulf %30, %32 : vector<8x64xf32>
    %cst_7 = arith.constant dense<0.000000e+00> : vector<8xf32>
    %34 = vector.multi_reduction <add>, %33, %cst_7 [1] : vector<8x64xf32> to vector<8xf32>
    %35 = vector.shape_cast %34 : vector<8xf32> to vector<8x1xf32>
    %c0_8 = arith.constant 0 : index
    %c0_9 = arith.constant 0 : index
    %36 = vector.load %arg5[%c0_8, %c0_9] : memref<1x2xf32, #tpu.memory_space<vmem>>, vector<1x1xf32>
    %37 = vector.broadcast %36 : vector<1x1xf32> to vector<8x1xf32>
    %38 = arith.addf %35, %37 : vector<8x1xf32>
    %c0_10 = arith.constant 0 : index
    %c0_11 = arith.constant 0 : index
    %39 = vector.load %arg6[%c0_10, %c0_11] : memref<8x2xf32, #tpu.memory_space<vmem>>, vector<8x1xf32>
    tpu.vector_store %arg6[%c0_10, %c0_11], %38 {strides = array<i32>} : memref<8x2xf32, #tpu.memory_space<vmem>>, vector<8x1xf32>,
    %40 = vector.extract_strided_slice %2 {offsets = [1, 0], sizes = [1, 64], strides = [1, 1]} : vector<2x64xf32> to vector<1x64xf32>
    %41 = vector.broadcast %40 : vector<1x64xf32> to vector<8x64xf32>
    %42 = arith.mulf %30, %41 : vector<8x64xf32>
    %cst_12 = arith.constant dense<0.000000e+00> : vector<8xf32>
    %43 = vector.multi_reduction <add>, %42, %cst_12 [1] : vector<8x64xf32> to vector<8xf32>
    %44 = vector.shape_cast %43 : vector<8xf32> to vector<8x1xf32>
    %c0_13 = arith.constant 0 : index
    %c1 = arith.constant 1 : index
    %45 = vector.load %arg5[%c0_13, %c1] : memref<1x2xf32, #tpu.memory_space<vmem>>, vector<1x1xf32>
    %46 = vector.broadcast %45 : vector<1x1xf32> to vector<8x1xf32>
    %47 = arith.addf %44, %46 : vector<8x1xf32>
    %c0_14 = arith.constant 0 : index
    %c1_15 = arith.constant 1 : index
    %48 = vector.load %arg6[%c0_14, %c1_15] : memref<8x2xf32, #tpu.memory_space<vmem>>, vector<8x1xf32>
    tpu.vector_store %arg6[%c0_14, %c1_15], %47 {strides = array<i32>} : memref<8x2xf32, #tpu.memory_space<vmem>>, vector<8x1xf32>,
    return
  }
  func.func @transform_0(%arg0: i32) -> (i32, i32) {
    %c0_i32 = arith.constant 0 : i32
    %c0_i32_0 = arith.constant 0 : i32
    return %arg0, %c0_i32 : i32, i32
  }
  func.func @transform_1(%arg0: i32) -> (i32, i32) {
    %c0_i32 = arith.constant 0 : i32
    %c0_i32_0 = arith.constant 0 : i32
    %c0_i32_1 = arith.constant 0 : i32
    return %c0_i32, %c0_i32_0 : i32, i32
  }
  func.func @transform_2(%arg0: i32) -> (i32, i32) {
    %c0_i32 = arith.constant 0 : i32
    %c0_i32_0 = arith.constant 0 : i32
    %c0_i32_1 = arith.constant 0 : i32
    return %c0_i32, %c0_i32_0 : i32, i32
  }
  func.func @transform_3(%arg0: i32) -> (i32, i32) {
    %c0_i32 = arith.constant 0 : i32
    %c0_i32_0 = arith.constant 0 : i32
    %c0_i32_1 = arith.constant 0 : i32
    return %c0_i32, %c0_i32_0 : i32, i32
  }
  func.func @transform_4(%arg0: i32) -> (i32, i32) {
    %c0_i32 = arith.constant 0 : i32
    %c0_i32_0 = arith.constant 0 : i32
    %c0_i32_1 = arith.constant 0 : i32
    return %c0_i32, %c0_i32_0 : i32, i32
  }
  func.func @transform_5(%arg0: i32) -> (i32, i32) {
    %c0_i32 = arith.constant 0 : i32
    %c0_i32_0 = arith.constant 0 : i32
    return %arg0, %c0_i32 : i32, i32
  }
}

</mosaic_0001>

<llo_original>
// kernel: tpu_custom_call.1
$region0: #{tpu_custom_call.1}
  #allocation0 [shape = 'u32[]', space=smem, size = 0x4, offset = 0x4, fixed_abs, tag = 'smem constant byte address 0x4 - core index']
  #allocation1 [shape = 'u32[144,128]{1,0:T(1,128)}', space=vmem, size = 0x12000, scoped, tag = 'internal scratch']
  %s0 = inlined_call_operand.vmem [shape: f32[8,4], index: 0, kind: input, shape index: {}]
  %s1 = inlined_call_operand.vmem [shape: f32[4,64], index: 1, kind: input, shape index: {}]
  %s2 = inlined_call_operand.vmem [shape: f32[1,64], index: 2, kind: input, shape index: {}]
  %s3 = inlined_call_operand.vmem [shape: f32[2,64], index: 3, kind: input, shape index: {}]
  %s4 = inlined_call_operand.vmem [shape: f32[1,2], index: 4, kind: input, shape index: {}]
  %s5 = inlined_call_operand.vmem [shape: f32[8,2], index: 5, kind: output, shape index: {}]
  %s6 = sld [smem:[#allocation0]]
  $region30: #{tpu_custom_call.1} parent=0
    _
  %s8 = ssub.s32 1, %s6
  %s9 = scalar_select 0, %s8, %s6
  // Predicated region
  $region2: #{tpu_custom_call.1} parent=0 // pred_check
    _
  $region3: #{tpu_custom_call.1} parent=0 // pred_check_branch
    %11 = sbr.rel (0) target = $region5
  $region4: #{tpu_custom_call.1} parent=0 // pred_region
    _
  $region5: #{tpu_custom_call.1} parent=0 // pred_fallthru
    _
  // Predicated region
  $region6: #{tpu_custom_call.1} parent=0 // pred_check
    _
  $region7: #{tpu_custom_call.1} parent=0 // pred_check_branch
    %13 = sbr.rel (0) target = $region9
  $region8: #{tpu_custom_call.1} parent=0 // pred_region
    _
  $region9: #{tpu_custom_call.1} parent=0 // pred_fallthru
    _
  // Predicated region
  $region10: #{tpu_custom_call.1} parent=0 // pred_check
    _
  $region11: #{tpu_custom_call.1} parent=0 // pred_check_branch
    %15 = sbr.rel (0) target = $region13
  $region12: #{tpu_custom_call.1} parent=0 // pred_region
    _
  $region13: #{tpu_custom_call.1} parent=0 // pred_fallthru
    _
  // Predicated region
  $region14: #{tpu_custom_call.1} parent=0 // pred_check
    _
  $region15: #{tpu_custom_call.1} parent=0 // pred_check_branch
    %17 = sbr.rel (0) target = $region17
  $region16: #{tpu_custom_call.1} parent=0 // pred_region
    _
  $region17: #{tpu_custom_call.1} parent=0 // pred_fallthru
    _
  // Predicated region
  $region18: #{tpu_custom_call.1} parent=0 // pred_check
    _
  $region19: #{tpu_custom_call.1} parent=0 // pred_check_branch
    %19 = sbr.rel (0) target = $region21
  $region20: #{tpu_custom_call.1} parent=0 // pred_region
    _
  $region21: #{tpu_custom_call.1} parent=0 // pred_fallthru
    _
  %v20 = vld [vmem:[%s0] sm:$0xff]
  %v21 = vld [vmem:[%s1] sm:$0xf]
  %v22 = vld [vmem:[%s3] sm:$0x3]
  %v23 = vld [vmem:[%s2] sm:$0x1]
  %25 = vset.pattern.permute.xlu0 0
  %26 = vperm.xlu0 %25, %v20
  %v27 = vpop.permute.xlu0 %26
  %v29 = vlaneseq
  %v30 = vshrl.u32 %v29, 7
  %v31 = vsub.s32 0, %v30
  %v32 = vrot.slane %v21, %v31
  %v33 = vmul.f32 %v27, %v32
  %v35 = vlaneseq
  %v36 = vshrl.u32 %v35, 7
  %v37 = vsub.s32 0, %v36
  %v38 = vrot.slane %v23, %v37
  %v40 = vadd.f32 %v38, %v33
  %41 = vset.pattern.permute.xlu0 1
  %42 = vperm.xlu0 %41, %v20
  %v43 = vpop.permute.xlu0 %42
  %v45 = vlaneseq
  %v46 = vshrl.u32 %v45, 7
  %v47 = vsub.s32 1, %v46
  %v48 = vrot.slane %v21, %v47
  %v49 = vmul.f32 %v43, %v48
  %v50 = vadd.f32 %v40, %v49
  %51 = vset.pattern.permute.xlu0 2
  %52 = vperm.xlu0 %51, %v20
  %v53 = vpop.permute.xlu0 %52
  %v55 = vlaneseq
  %v56 = vshrl.u32 %v55, 7
  %v57 = vsub.s32 2, %v56
  %v58 = vrot.slane %v21, %v57
  %v59 = vmul.f32 %v53, %v58
  %v60 = vadd.f32 %v50, %v59
  %61 = vset.pattern.permute.xlu0 3
  %62 = vperm.xlu0 %61, %v20
  %v63 = vpop.permute.xlu0 %62
  %v65 = vlaneseq
  %v66 = vshrl.u32 %v65, 7
  %v67 = vsub.s32 3, %v66
  %v68 = vrot.slane %v21, %v67
  %v69 = vmul.f32 %v63, %v68
  %v70 = vadd.f32 %v60, %v69
  %v71 = vmax.f32 %v70, 0.0
  %v72 = vlaneseq
  %v73 = vshrl.u32 %v72, 7
  %v74 = vsub.s32 0, %v73
  %v75 = vrot.slane %v22, %v74
  %v76 = vmul.f32 %v71, %v75
  %vm77 = vcmask 523264
  %v78 = vsel %vm77, %v76, 0.0
  %79 = vadd.xlane.f32.xlu0 %v78
  %v80 = vpop.xlane.xlu0 %79
  %v81 = vld [vmem:[%s4] sm:$0x1]
  %v83 = vlaneseq
  %v84 = vshrl.u32 %v83, 7
  %v85 = vsub.s32 0, %v84
  %v86 = vrot.slane %v81, %v85
  %v88 = vadd.f32 %v80, %v86
  %vm89 = vcmask 7168
  %90 = vst.msk [vmem:[%s5] sm:$0xff] %vm89, %v88
  %v91 = vlaneseq
  %v92 = vshrl.u32 %v91, 7
  %v93 = vsub.s32 1, %v92
  %v94 = vrot.slane %v22, %v93
  %v95 = vmul.f32 %v71, %v94
  %v96 = vsel %vm77, %v95, 0.0
  %97 = vadd.xlane.f32.xlu0 %v96
  %v98 = vpop.xlane.xlu0 %97
  %v99 = vld [vmem:[%s4] sm:$0x1]
  %v101 = vlaneseq
  %v102 = vshrl.u32 %v101, 7
  %v103 = vsub.s32 0, %v102
  %v104 = vrot.slane %v99, %v103
  %v106 = vadd.f32 %v98, %v104
  %vm107 = vcmask 15368
  %108 = vst.msk [vmem:[%s5] sm:$0xff] %vm107, %v106
  // Predicated region
  $region22: #{tpu_custom_call.1} parent=0 // pred_check
    _
  $region23: #{tpu_custom_call.1} parent=0 // pred_check_branch
    %110 = sbr.rel (0) target = $region25
  $region24: #{tpu_custom_call.1} parent=0 // pred_region
    _
  $region25: #{tpu_custom_call.1} parent=0 // pred_fallthru
    _
  // Predicated region
  $region26: #{tpu_custom_call.1} parent=0 // pred_check
    _
  $region27: #{tpu_custom_call.1} parent=0 // pred_check_branch
    %112 = sbr.rel (0) target = $region29
  $region28: #{tpu_custom_call.1} parent=0 // pred_region
    _
  $region29: #{tpu_custom_call.1} parent=0 // pred_fallthru
    _

</llo_original>
